<compile_context>
chip_gen: v5e
topology: v5e:2x2
jax: 0.10.0
libtpu: 0.0.40
codegen_flags: <defaults>
</compile_context>

<pallas_src>
from functools import partial

import jax
import jax.numpy as jnp
from jax.experimental import pallas as pl
from jax.experimental.pallas import tpu as pltpu

N_STATES = 4
N_ACTIONS = 2
HIDDEN = 16
N_HIDDEN_LAYERS = 10                    # fc2 .. fc11
N_LAYERS = 1 + N_HIDDEN_LAYERS + 1      # fc1 + fc2..fc11 + out = 12
MAX_BATCH_TILE = 256                    # batch tile for large (training) batches


def _net_kernel(x_ref, w_ref, b_ref, out_ref, *, skip: bool):
    """Fused forward: 12 dependent 16-wide matmuls + ReLU/residual, all in VMEM.

    x_ref:   (TB, 16)      input tile, zero-padded in batch and feature dims
    w_ref:   (12, 16, 16)  [0]=fc1 (rows>=4 zero), [1..10]=fc2..fc11,
                           [11]=out (cols>=2 zero); f32 or bf16
    b_ref:   (12, 1, 16)   matching biases (always f32)
    out_ref: (TB, 16)      f32; cols >= N_ACTIONS are zero
    """
    wdt = w_ref.dtype

    def layer(h, i):
        # Cast activations to the weight dtype so bf16 weights take the bf16
        # MXU fast path (no-op when weights are f32); accumulate in f32.
        return jnp.dot(h.astype(wdt), w_ref[i],
                       preferred_element_type=jnp.float32) + b_ref[i]

    # fc1 + ReLU
    h = jnp.maximum(layer(x_ref[...], 0), 0.0)

    if skip:
        res = h
        for i in range(N_HIDDEN_LAYERS):        # weight-stack index i + 1
            z = layer(h, i + 1)
            if i % 2 == 1:                      # fc3, fc5, fc7, fc9, fc11
                z = z + res
            h = jnp.maximum(z, 0.0)
            if i % 2 == 1:                      # update residual after add+relu
                res = h
    else:
        for i in range(N_HIDDEN_LAYERS):
            h = jnp.maximum(layer(h, i + 1), 0.0)

    # Output layer (no activation).
    out_ref[...] = layer(h, N_LAYERS - 1)


@partial(jax.jit, static_argnames=("skip",))
def net_forward(x, packed_params, skip=True):
    """x: (batch, N_STATES) f32.  Returns (batch, N_ACTIONS) f32."""
    w_stack, b_stack = packed_params
    batch = x.shape[0]

    # Sublane-aligned batch; tile it for large batches so the pipeline streams
    # input/output tiles while the packed weights stay VMEM-resident.
    bpad = max(8, ((batch + 7) // 8) * 8)
    tb = bpad if bpad <= MAX_BATCH_TILE else MAX_BATCH_TILE
    bpad = ((bpad + tb - 1) // tb) * tb
    grid = (bpad // tb,)

    # Pad batch and features to HIDDEN (zero padding is exact: padded w1 rows
    # are zero, padded output rows/cols are discarded below).
    xp = jnp.zeros((bpad, HIDDEN), dtype=w_stack.dtype)
    xp = xp.at[:batch, :N_STATES].set(x.astype(w_stack.dtype))

    out = pl.pallas_call(
        partial(_net_kernel, skip=skip),
        out_shape=jax.ShapeDtypeStruct((bpad, HIDDEN), jnp.float32),
        grid=grid,
        in_specs=[
            pl.BlockSpec((tb, HIDDEN), lambda i: (i, 0)),
            # Constant index maps -> weight/bias buffers are not re-fetched
            # across batch tiles.
            pl.BlockSpec((N_LAYERS, HIDDEN, HIDDEN), lambda i: (0, 0, 0)),
            pl.BlockSpec((N_LAYERS, 1, HIDDEN), lambda i: (0, 0, 0)),
        ],
        out_specs=pl.BlockSpec((tb, HIDDEN), lambda i: (i, 0)),
        compiler_params=pltpu.CompilerParams(
            dimension_semantics=("parallel",)),   # megacore sharding on v7x
    )(xp, w_stack, b_stack)

    return out[:batch, :N_ACTIONS]


def init_raw_params(key):
    """Init mirroring the module: weights ~ N(0, 0.1),
    biases ~ U(-1/sqrt(fan_in), 1/sqrt(fan_in)) (PyTorch Linear default)."""
    keys = jax.random.split(key, 6)
    w1 = 0.1 * jax.random.normal(keys[0], (N_STATES, HIDDEN), jnp.float32)
    b1 = jax.random.uniform(keys[1], (HIDDEN,), jnp.float32,
                            minval=-1.0 / jnp.sqrt(N_STATES),
                            maxval=1.0 / jnp.sqrt(N_STATES))
    wh = 0.1 * jax.random.normal(keys[2], (N_HIDDEN_LAYERS, HIDDEN, HIDDEN),
                                 jnp.float32)
    bh = jax.random.uniform(keys[3], (N_HIDDEN_LAYERS, HIDDEN), jnp.float32,
                            minval=-1.0 / jnp.sqrt(HIDDEN),
                            maxval=1.0 / jnp.sqrt(HIDDEN))
    wo = 0.1 * jax.random.normal(keys[4], (HIDDEN, N_ACTIONS), jnp.float32)
    bo = jax.random.uniform(keys[5], (N_ACTIONS,), jnp.float32,
                            minval=-1.0 / jnp.sqrt(HIDDEN),
                            maxval=1.0 / jnp.sqrt(HIDDEN))
    return w1, b1, wh, bh, wo, bo


def pack_params(w1, b1, wh, bh, wo, bo, dtype=jnp.float32):
    """Pack all layers into one weight stack and one bias stack.

    w_stack: (12, 16, 16) in `dtype` (fc1 K-padded, out N-padded with zeros)
    b_stack: (12, 1, 16)  f32 (out bias N-padded with zeros)
    """
    w_stack = jnp.zeros((N_LAYERS, HIDDEN, HIDDEN), jnp.float32)
    w_stack = w_stack.at[0, :N_STATES, :].set(w1)
    w_stack = w_stack.at[1:1 + N_HIDDEN_LAYERS].set(wh)
    w_stack = w_stack.at[N_LAYERS - 1, :, :N_ACTIONS].set(wo)

    b_stack = jnp.zeros((N_LAYERS, 1, HIDDEN), jnp.float32)
    b_stack = b_stack.at[0, 0, :].set(b1)
    b_stack = b_stack.at[1:1 + N_HIDDEN_LAYERS, 0, :].set(bh)
    b_stack = b_stack.at[N_LAYERS - 1, 0, :N_ACTIONS].set(bo)

    return w_stack.astype(dtype), b_stack


def reference_forward(x, raw_params, skip=True):
    """Pure-JAX reference for correctness checking (unpacked params, f32)."""
    w1, b1, wh, bh, wo, bo = raw_params
    h = jnp.maximum(x @ w1 + b1, 0.0)
    if skip:
        res = h
        for i in range(N_HIDDEN_LAYERS):
            z = h @ wh[i] + bh[i]
            if i % 2 == 1:
                z = z + res
            h = jnp.maximum(z, 0.0)
            if i % 2 == 1:
                res = h
    else:
        for i in range(N_HIDDEN_LAYERS):
            h = jnp.maximum(h @ wh[i] + bh[i], 0.0)
    return h @ wo + bo


if __name__ == "__main__":
    key = jax.random.PRNGKey(0)
    pkey, xkey, xkey2 = jax.random.split(key, 3)

    raw = init_raw_params(pkey)
    x = jax.random.normal(xkey, (2, N_STATES), jnp.float32)     # batch=2 states
    x_big = jax.random.normal(xkey2, (32, N_STATES), jnp.float32)

    # ---- f32 path (default; exact match to reference) ----
    packed_f32 = pack_params(*raw, dtype=jnp.float32)

    out_skip = jax.block_until_ready(net_forward(x, packed_f32, skip=True))
    out_plain = jax.block_until_ready(net_forward(x, packed_f32, skip=False))
    ref_skip = reference_forward(x, raw, skip=True)
    ref_plain = reference_forward(x, raw, skip=False)

    assert out_skip.shape == (2, N_ACTIONS)
    assert out_plain.shape == (2, N_ACTIONS)
    assert jnp.allclose(out_skip, ref_skip, atol=1e-5, rtol=1e-5)
    assert jnp.allclose(out_plain, ref_plain, atol=1e-5, rtol=1e-5)

    # ---- training-style batch (exercises the batch-tiled path) ----
    out_big = jax.block_until_ready(net_forward(x_big, packed_f32, skip=True))
    ref_big = reference_forward(x_big, raw, skip=True)
    assert out_big.shape == (32, N_ACTIONS)
    assert jnp.allclose(out_big, ref_big, atol=1e-5, rtol=1e-5)

    # ---- bf16-weight path (recommended on v6e/v7x); loose tol vs f32 ref ----
    packed_bf16 = pack_params(*raw, dtype=jnp.bfloat16)
    out_bf16 = jax.block_until_ready(net_forward(x, packed_bf16, skip=True))
    assert out_bf16.shape == (2, N_ACTIONS)
    assert float(jnp.max(jnp.abs(out_bf16 - ref_skip))) < 0.1

    print("KERNEL_OK")
</pallas_src>

<mosaic_0001>
module attributes {stable_mosaic.version = 11 : i64} {
  func.func @_net_kernel(%arg0: i32, %arg1: memref<8x16xf32, #tpu.memory_space<vmem>>, %arg2: memref<12x16x16xf32, #tpu.memory_space<vmem>>, %arg3: memref<12x1x16xf32, #tpu.memory_space<vmem>>, %arg4: memref<8x16xf32, #tpu.memory_space<vmem>>) attributes {dimension_semantics = [#tpu.dimension_semantics<parallel>], iteration_bounds = array<i64: 1>, scalar_prefetch = 0 : i64, scratch_operands = 0 : i64, tpu.core_type = #tpu.core_type<tc>, window_params = [{transform_indices = @transform_0, window_bounds = array<i64: 8, 16>}, {pipeline_mode = #tpu.pipeline_mode<synchronous>, transform_indices = @transform_1, window_bounds = array<i64: 12, 16, 16>}, {pipeline_mode = #tpu.pipeline_mode<synchronous>, transform_indices = @transform_2, window_bounds = array<i64: 12, 1, 16>}, {transform_indices = @transform_3, window_bounds = array<i64: 8, 16>}]} {
    %c0 = arith.constant 0 : index
    %c0_0 = arith.constant 0 : index
    %0 = vector.load %arg1[%c0, %c0_0] : memref<8x16xf32, #tpu.memory_space<vmem>>, vector<8x16xf32>
    %c0_1 = arith.constant 0 : index
    %c0_2 = arith.constant 0 : index
    %c0_3 = arith.constant 0 : index
    %1 = vector.load %arg2[%c0_1, %c0_2, %c0_3] : memref<12x16x16xf32, #tpu.memory_space<vmem>>, vector<1x16x16xf32>
    %2 = vector.shape_cast %1 : vector<1x16x16xf32> to vector<16x16xf32>
    %cst = arith.constant dense<0.000000e+00> : vector<8x16xf32>
    %3 = tpu.matmul %0, %2, %cst {dimension_numbers = #tpu.dot_dimension_numbers<[1], [0], [0], [1], [0, 0, 1, 1], [], []>} : vector<8x16xf32>, vector<16x16xf32>, vector<8x16xf32> -> vector<8x16xf32>
    %c0_4 = arith.constant 0 : index
    %c0_5 = arith.constant 0 : index
    %c0_6 = arith.constant 0 : index
    %4 = vector.load %arg3[%c0_4, %c0_5, %c0_6] : memref<12x1x16xf32, #tpu.memory_space<vmem>>, vector<1x1x16xf32>
    %5 = vector.shape_cast %4 : vector<1x1x16xf32> to vector<1x16xf32>
    %6 = vector.broadcast %5 : vector<1x16xf32> to vector<8x16xf32>
    %7 = arith.addf %3, %6 : vector<8x16xf32>
    %cst_7 = arith.constant 0.000000e+00 : f32
    %8 = vector.broadcast %cst_7 : f32 to vector<8x16xf32>
    %9 = arith.maximumf %7, %8 : vector<8x16xf32>
    %c1 = arith.constant 1 : index
    %c0_8 = arith.constant 0 : index
    %c0_9 = arith.constant 0 : index
    %10 = vector.load %arg2[%c1, %c0_8, %c0_9] : memref<12x16x16xf32, #tpu.memory_space<vmem>>, vector<1x16x16xf32>
    %11 = vector.shape_cast %10 : vector<1x16x16xf32> to vector<16x16xf32>
    %cst_10 = arith.constant dense<0.000000e+00> : vector<8x16xf32>
    %12 = tpu.matmul %9, %11, %cst_10 {dimension_numbers = #tpu.dot_dimension_numbers<[1], [0], [0], [1], [0, 0, 1, 1], [], []>} : vector<8x16xf32>, vector<16x16xf32>, vector<8x16xf32> -> vector<8x16xf32>
    %c1_11 = arith.constant 1 : index
    %c0_12 = arith.constant 0 : index
    %c0_13 = arith.constant 0 : index
    %13 = vector.load %arg3[%c1_11, %c0_12, %c0_13] : memref<12x1x16xf32, #tpu.memory_space<vmem>>, vector<1x1x16xf32>
    %14 = vector.shape_cast %13 : vector<1x1x16xf32> to vector<1x16xf32>
    %15 = vector.broadcast %14 : vector<1x16xf32> to vector<8x16xf32>
    %16 = arith.addf %12, %15 : vector<8x16xf32>
    %cst_14 = arith.constant 0.000000e+00 : f32
    %17 = vector.broadcast %cst_14 : f32 to vector<8x16xf32>
    %18 = arith.maximumf %16, %17 : vector<8x16xf32>
    %c2 = arith.constant 2 : index
    %c0_15 = arith.constant 0 : index
    %c0_16 = arith.constant 0 : index
    %19 = vector.load %arg2[%c2, %c0_15, %c0_16] : memref<12x16x16xf32, #tpu.memory_space<vmem>>, vector<1x16x16xf32>
    %20 = vector.shape_cast %19 : vector<1x16x16xf32> to vector<16x16xf32>
    %cst_17 = arith.constant dense<0.000000e+00> : vector<8x16xf32>
    %21 = tpu.matmul %18, %20, %cst_17 {dimension_numbers = #tpu.dot_dimension_numbers<[1], [0], [0], [1], [0, 0, 1, 1], [], []>} : vector<8x16xf32>, vector<16x16xf32>, vector<8x16xf32> -> vector<8x16xf32>
    %c2_18 = arith.constant 2 : index
    %c0_19 = arith.constant 0 : index
    %c0_20 = arith.constant 0 : index
    %22 = vector.load %arg3[%c2_18, %c0_19, %c0_20] : memref<12x1x16xf32, #tpu.memory_space<vmem>>, vector<1x1x16xf32>
    %23 = vector.shape_cast %22 : vector<1x1x16xf32> to vector<1x16xf32>
    %24 = vector.broadcast %23 : vector<1x16xf32> to vector<8x16xf32>
    %25 = arith.addf %21, %24 : vector<8x16xf32>
    %26 = arith.addf %25, %9 : vector<8x16xf32>
    %cst_21 = arith.constant 0.000000e+00 : f32
    %27 = vector.broadcast %cst_21 : f32 to vector<8x16xf32>
    %28 = arith.maximumf %26, %27 : vector<8x16xf32>
    %c3 = arith.constant 3 : index
    %c0_22 = arith.constant 0 : index
    %c0_23 = arith.constant 0 : index
    %29 = vector.load %arg2[%c3, %c0_22, %c0_23] : memref<12x16x16xf32, #tpu.memory_space<vmem>>, vector<1x16x16xf32>
    %30 = vector.shape_cast %29 : vector<1x16x16xf32> to vector<16x16xf32>
    %cst_24 = arith.constant dense<0.000000e+00> : vector<8x16xf32>
    %31 = tpu.matmul %28, %30, %cst_24 {dimension_numbers = #tpu.dot_dimension_numbers<[1], [0], [0], [1], [0, 0, 1, 1], [], []>} : vector<8x16xf32>, vector<16x16xf32>, vector<8x16xf32> -> vector<8x16xf32>
    %c3_25 = arith.constant 3 : index
    %c0_26 = arith.constant 0 : index
    %c0_27 = arith.constant 0 : index
    %32 = vector.load %arg3[%c3_25, %c0_26, %c0_27] : memref<12x1x16xf32, #tpu.memory_space<vmem>>, vector<1x1x16xf32>
    %33 = vector.shape_cast %32 : vector<1x1x16xf32> to vector<1x16xf32>
    %34 = vector.broadcast %33 : vector<1x16xf32> to vector<8x16xf32>
    %35 = arith.addf %31, %34 : vector<8x16xf32>
    %cst_28 = arith.constant 0.000000e+00 : f32
    %36 = vector.broadcast %cst_28 : f32 to vector<8x16xf32>
    %37 = arith.maximumf %35, %36 : vector<8x16xf32>
    %c4 = arith.constant 4 : index
    %c0_29 = arith.constant 0 : index
    %c0_30 = arith.constant 0 : index
    %38 = vector.load %arg2[%c4, %c0_29, %c0_30] : memref<12x16x16xf32, #tpu.memory_space<vmem>>, vector<1x16x16xf32>
    %39 = vector.shape_cast %38 : vector<1x16x16xf32> to vector<16x16xf32>
    %cst_31 = arith.constant dense<0.000000e+00> : vector<8x16xf32>
    %40 = tpu.matmul %37, %39, %cst_31 {dimension_numbers = #tpu.dot_dimension_numbers<[1], [0], [0], [1], [0, 0, 1, 1], [], []>} : vector<8x16xf32>, vector<16x16xf32>, vector<8x16xf32> -> vector<8x16xf32>
    %c4_32 = arith.constant 4 : index
    %c0_33 = arith.constant 0 : index
    %c0_34 = arith.constant 0 : index
    %41 = vector.load %arg3[%c4_32, %c0_33, %c0_34] : memref<12x1x16xf32, #tpu.memory_space<vmem>>, vector<1x1x16xf32>
    %42 = vector.shape_cast %41 : vector<1x1x16xf32> to vector<1x16xf32>
    %43 = vector.broadcast %42 : vector<1x16xf32> to vector<8x16xf32>
    %44 = arith.addf %40, %43 : vector<8x16xf32>
    %45 = arith.addf %44, %28 : vector<8x16xf32>
    %cst_35 = arith.constant 0.000000e+00 : f32
    %46 = vector.broadcast %cst_35 : f32 to vector<8x16xf32>
    %47 = arith.maximumf %45, %46 : vector<8x16xf32>
    %c5 = arith.constant 5 : index
    %c0_36 = arith.constant 0 : index
    %c0_37 = arith.constant 0 : index
    %48 = vector.load %arg2[%c5, %c0_36, %c0_37] : memref<12x16x16xf32, #tpu.memory_space<vmem>>, vector<1x16x16xf32>
    %49 = vector.shape_cast %48 : vector<1x16x16xf32> to vector<16x16xf32>
    %cst_38 = arith.constant dense<0.000000e+00> : vector<8x16xf32>
    %50 = tpu.matmul %47, %49, %cst_38 {dimension_numbers = #tpu.dot_dimension_numbers<[1], [0], [0], [1], [0, 0, 1, 1], [], []>} : vector<8x16xf32>, vector<16x16xf32>, vector<8x16xf32> -> vector<8x16xf32>
    %c5_39 = arith.constant 5 : index
    %c0_40 = arith.constant 0 : index
    %c0_41 = arith.constant 0 : index
    %51 = vector.load %arg3[%c5_39, %c0_40, %c0_41] : memref<12x1x16xf32, #tpu.memory_space<vmem>>, vector<1x1x16xf32>
    %52 = vector.shape_cast %51 : vector<1x1x16xf32> to vector<1x16xf32>
    %53 = vector.broadcast %52 : vector<1x16xf32> to vector<8x16xf32>
    %54 = arith.addf %50, %53 : vector<8x16xf32>
    %cst_42 = arith.constant 0.000000e+00 : f32
    %55 = vector.broadcast %cst_42 : f32 to vector<8x16xf32>
    %56 = arith.maximumf %54, %55 : vector<8x16xf32>
    %c6 = arith.constant 6 : index
    %c0_43 = arith.constant 0 : index
    %c0_44 = arith.constant 0 : index
    %57 = vector.load %arg2[%c6, %c0_43, %c0_44] : memref<12x16x16xf32, #tpu.memory_space<vmem>>, vector<1x16x16xf32>
    %58 = vector.shape_cast %57 : vector<1x16x16xf32> to vector<16x16xf32>
    %cst_45 = arith.constant dense<0.000000e+00> : vector<8x16xf32>
    %59 = tpu.matmul %56, %58, %cst_45 {dimension_numbers = #tpu.dot_dimension_numbers<[1], [0], [0], [1], [0, 0, 1, 1], [], []>} : vector<8x16xf32>, vector<16x16xf32>, vector<8x16xf32> -> vector<8x16xf32>
    %c6_46 = arith.constant 6 : index
    %c0_47 = arith.constant 0 : index
    %c0_48 = arith.constant 0 : index
    %60 = vector.load %arg3[%c6_46, %c0_47, %c0_48] : memref<12x1x16xf32, #tpu.memory_space<vmem>>, vector<1x1x16xf32>
    %61 = vector.shape_cast %60 : vector<1x1x16xf32> to vector<1x16xf32>
    %62 = vector.broadcast %61 : vector<1x16xf32> to vector<8x16xf32>
    %63 = arith.addf %59, %62 : vector<8x16xf32>
    %64 = arith.addf %63, %47 : vector<8x16xf32>
    %cst_49 = arith.constant 0.000000e+00 : f32
    %65 = vector.broadcast %cst_49 : f32 to vector<8x16xf32>
    %66 = arith.maximumf %64, %65 : vector<8x16xf32>
    %c7 = arith.constant 7 : index
    %c0_50 = arith.constant 0 : index
    %c0_51 = arith.constant 0 : index
    %67 = vector.load %arg2[%c7, %c0_50, %c0_51] : memref<12x16x16xf32, #tpu.memory_space<vmem>>, vector<1x16x16xf32>
    %68 = vector.shape_cast %67 : vector<1x16x16xf32> to vector<16x16xf32>
    %cst_52 = arith.constant dense<0.000000e+00> : vector<8x16xf32>
    %69 = tpu.matmul %66, %68, %cst_52 {dimension_numbers = #tpu.dot_dimension_numbers<[1], [0], [0], [1], [0, 0, 1, 1], [], []>} : vector<8x16xf32>, vector<16x16xf32>, vector<8x16xf32> -> vector<8x16xf32>
    %c7_53 = arith.constant 7 : index
    %c0_54 = arith.constant 0 : index
    %c0_55 = arith.constant 0 : index
    %70 = vector.load %arg3[%c7_53, %c0_54, %c0_55] : memref<12x1x16xf32, #tpu.memory_space<vmem>>, vector<1x1x16xf32>
    %71 = vector.shape_cast %70 : vector<1x1x16xf32> to vector<1x16xf32>
    %72 = vector.broadcast %71 : vector<1x16xf32> to vector<8x16xf32>
    %73 = arith.addf %69, %72 : vector<8x16xf32>
    %cst_56 = arith.constant 0.000000e+00 : f32
    %74 = vector.broadcast %cst_56 : f32 to vector<8x16xf32>
    %75 = arith.maximumf %73, %74 : vector<8x16xf32>
    %c8 = arith.constant 8 : index
    %c0_57 = arith.constant 0 : index
    %c0_58 = arith.constant 0 : index
    %76 = vector.load %arg2[%c8, %c0_57, %c0_58] : memref<12x16x16xf32, #tpu.memory_space<vmem>>, vector<1x16x16xf32>
    %77 = vector.shape_cast %76 : vector<1x16x16xf32> to vector<16x16xf32>
    %cst_59 = arith.constant dense<0.000000e+00> : vector<8x16xf32>
    %78 = tpu.matmul %75, %77, %cst_59 {dimension_numbers = #tpu.dot_dimension_numbers<[1], [0], [0], [1], [0, 0, 1, 1], [], []>} : vector<8x16xf32>, vector<16x16xf32>, vector<8x16xf32> -> vector<8x16xf32>
    %c8_60 = arith.constant 8 : index
    %c0_61 = arith.constant 0 : index
    %c0_62 = arith.constant 0 : index
    %79 = vector.load %arg3[%c8_60, %c0_61, %c0_62] : memref<12x1x16xf32, #tpu.memory_space<vmem>>, vector<1x1x16xf32>
    %80 = vector.shape_cast %79 : vector<1x1x16xf32> to vector<1x16xf32>
    %81 = vector.broadcast %80 : vector<1x16xf32> to vector<8x16xf32>
    %82 = arith.addf %78, %81 : vector<8x16xf32>
    %83 = arith.addf %82, %66 : vector<8x16xf32>
    %cst_63 = arith.constant 0.000000e+00 : f32
    %84 = vector.broadcast %cst_63 : f32 to vector<8x16xf32>
    %85 = arith.maximumf %83, %84 : vector<8x16xf32>
    %c9 = arith.constant 9 : index
    %c0_64 = arith.constant 0 : index
    %c0_65 = arith.constant 0 : index
    %86 = vector.load %arg2[%c9, %c0_64, %c0_65] : memref<12x16x16xf32, #tpu.memory_space<vmem>>, vector<1x16x16xf32>
    %87 = vector.shape_cast %86 : vector<1x16x16xf32> to vector<16x16xf32>
    %cst_66 = arith.constant dense<0.000000e+00> : vector<8x16xf32>
    %88 = tpu.matmul %85, %87, %cst_66 {dimension_numbers = #tpu.dot_dimension_numbers<[1], [0], [0], [1], [0, 0, 1, 1], [], []>} : vector<8x16xf32>, vector<16x16xf32>, vector<8x16xf32> -> vector<8x16xf32>
    %c9_67 = arith.constant 9 : index
    %c0_68 = arith.constant 0 : index
    %c0_69 = arith.constant 0 : index
    %89 = vector.load %arg3[%c9_67, %c0_68, %c0_69] : memref<12x1x16xf32, #tpu.memory_space<vmem>>, vector<1x1x16xf32>
    %90 = vector.shape_cast %89 : vector<1x1x16xf32> to vector<1x16xf32>
    %91 = vector.broadcast %90 : vector<1x16xf32> to vector<8x16xf32>
    %92 = arith.addf %88, %91 : vector<8x16xf32>
    %cst_70 = arith.constant 0.000000e+00 : f32
    %93 = vector.broadcast %cst_70 : f32 to vector<8x16xf32>
    %94 = arith.maximumf %92, %93 : vector<8x16xf32>
    %c10 = arith.constant 10 : index
    %c0_71 = arith.constant 0 : index
    %c0_72 = arith.constant 0 : index
    %95 = vector.load %arg2[%c10, %c0_71, %c0_72] : memref<12x16x16xf32, #tpu.memory_space<vmem>>, vector<1x16x16xf32>
    %96 = vector.shape_cast %95 : vector<1x16x16xf32> to vector<16x16xf32>
    %cst_73 = arith.constant dense<0.000000e+00> : vector<8x16xf32>
    %97 = tpu.matmul %94, %96, %cst_73 {dimension_numbers = #tpu.dot_dimension_numbers<[1], [0], [0], [1], [0, 0, 1, 1], [], []>} : vector<8x16xf32>, vector<16x16xf32>, vector<8x16xf32> -> vector<8x16xf32>
    %c10_74 = arith.constant 10 : index
    %c0_75 = arith.constant 0 : index
    %c0_76 = arith.constant 0 : index
    %98 = vector.load %arg3[%c10_74, %c0_75, %c0_76] : memref<12x1x16xf32, #tpu.memory_space<vmem>>, vector<1x1x16xf32>
    %99 = vector.shape_cast %98 : vector<1x1x16xf32> to vector<1x16xf32>
    %100 = vector.broadcast %99 : vector<1x16xf32> to vector<8x16xf32>
    %101 = arith.addf %97, %100 : vector<8x16xf32>
    %102 = arith.addf %101, %85 : vector<8x16xf32>
    %cst_77 = arith.constant 0.000000e+00 : f32
    %103 = vector.broadcast %cst_77 : f32 to vector<8x16xf32>
    %104 = arith.maximumf %102, %103 : vector<8x16xf32>
    %c11 = arith.constant 11 : index
    %c0_78 = arith.constant 0 : index
    %c0_79 = arith.constant 0 : index
    %105 = vector.load %arg2[%c11, %c0_78, %c0_79] : memref<12x16x16xf32, #tpu.memory_space<vmem>>, vector<1x16x16xf32>
    %106 = vector.shape_cast %105 : vector<1x16x16xf32> to vector<16x16xf32>
    %cst_80 = arith.constant dense<0.000000e+00> : vector<8x16xf32>
    %107 = tpu.matmul %104, %106, %cst_80 {dimension_numbers = #tpu.dot_dimension_numbers<[1], [0], [0], [1], [0, 0, 1, 1], [], []>} : vector<8x16xf32>, vector<16x16xf32>, vector<8x16xf32> -> vector<8x16xf32>
    %c11_81 = arith.constant 11 : index
    %c0_82 = arith.constant 0 : index
    %c0_83 = arith.constant 0 : index
    %108 = vector.load %arg3[%c11_81, %c0_82, %c0_83] : memref<12x1x16xf32, #tpu.memory_space<vmem>>, vector<1x1x16xf32>
    %109 = vector.shape_cast %108 : vector<1x1x16xf32> to vector<1x16xf32>
    %110 = vector.broadcast %109 : vector<1x16xf32> to vector<8x16xf32>
    %111 = arith.addf %107, %110 : vector<8x16xf32>
    %c0_84 = arith.constant 0 : index
    %c0_85 = arith.constant 0 : index
    %112 = vector.load %arg4[%c0_84, %c0_85] : memref<8x16xf32, #tpu.memory_space<vmem>>, vector<8x16xf32>
    tpu.vector_store %arg4[%c0_84, %c0_85], %111 {strides = array<i32>} : memref<8x16xf32, #tpu.memory_space<vmem>>, vector<8x16xf32>,
    return
  }
  func.func @transform_0(%arg0: i32) -> (i32, i32) {
    %c0_i32 = arith.constant 0 : i32
    %c0_i32_0 = arith.constant 0 : i32
    return %arg0, %c0_i32 : i32, i32
  }
  func.func @transform_1(%arg0: i32) -> (i32, i32, i32) {
    %c0_i32 = arith.constant 0 : i32
    %c0_i32_0 = arith.constant 0 : i32
    %c0_i32_1 = arith.constant 0 : i32
    %c0_i32_2 = arith.constant 0 : i32
    return %c0_i32, %c0_i32_0, %c0_i32_1 : i32, i32, i32
  }
  func.func @transform_2(%arg0: i32) -> (i32, i32, i32) {
    %c0_i32 = arith.constant 0 : i32
    %c0_i32_0 = arith.constant 0 : i32
    %c0_i32_1 = arith.constant 0 : i32
    %c0_i32_2 = arith.constant 0 : i32
    return %c0_i32, %c0_i32_0, %c0_i32_1 : i32, i32, i32
  }
  func.func @transform_3(%arg0: i32) -> (i32, i32) {
    %c0_i32 = arith.constant 0 : i32
    %c0_i32_0 = arith.constant 0 : i32
    return %arg0, %c0_i32 : i32, i32
  }
}

</mosaic_0001>

<llo_original>
// kernel: net_forward.1
$region0: #{net_forward.1}
  #allocation0 [shape = 'u32[]', space=smem, size = 0x4, offset = 0x4, fixed_abs, tag = 'smem constant byte address 0x4 - core index']
  #allocation1 [shape = 'u32[72,128]{1,0:T(1,128)}', space=vmem, size = 0x9000, scoped, tag = 'internal scratch']
  %s0 = inlined_call_operand.vmem [shape: f32[8,16], index: 0, kind: input, shape index: {}]
  %s1 = inlined_call_operand.hbm [shape: f32[12,16,16], index: 1, kind: input, shape index: {}]
  %s2 = inlined_call_operand.vmem [shape: f32[12,1,16], index: 2, kind: input, shape index: {}]
  %s3 = inlined_call_operand.vmem [shape: f32[8,16], index: 3, kind: output, shape index: {}]
  %s4 = sld [smem:[#allocation0]]
  $region26: #{net_forward.1} parent=0
    _
  %s6 = ssub.s32 1, %s4
  %s7 = scalar_select 0, %s6, %s4
  $region1: #{net_forward.1} parent=0
    #allocation2 [shape = 'u8[98304]{0}', space=vmem, size = 0x18000, scoped, tag = 'input window, operand 1, single buffered']
    #allocation3 [shape = 's32[1]{0}', space=sflag, size = 0x4, scoped, tag = 'scoped memory for net_forward.1']
    %8 = vsyncpa [#allocation3], 0
    // Predicated region
    $region2: #{net_forward.1} parent=1 // pred_check
      _
    $region3: #{net_forward.1} parent=1 // pred_check_branch
      %10 = sbr.rel (0) target = $region5
    $region4: #{net_forward.1} parent=1 // pred_region
      _
    $region5: #{net_forward.1} parent=1 // pred_fallthru
      _
    // Predicated region
    $region6: #{net_forward.1} parent=1 // pred_check
      _
    $region7: #{net_forward.1} parent=1 // pred_check_branch
      %12 = sbr.rel (0) target = $region9
    $region8: #{net_forward.1} parent=1 // pred_region
      %14 = vsyncadd [#allocation3], 0
      %s15 = sshll.u32 %s1, 4
      %s16 = int_to_ptr.hbm [resolvable:$true] %s15
      %s17 = sshll.u32 [#allocation2], 4
      %s18 = int_to_ptr.vmem [resolvable:$true] %s17
      %23 = dma.hbm_to_vmem [thread:$0]  %s16, 3072, %s18, [#allocation3], 128, 128, 8
    $region9: #{net_forward.1} parent=1 // pred_fallthru
      _
    // Predicated region
    $region10: #{net_forward.1} parent=1 // pred_check
      _
    $region11: #{net_forward.1} parent=1 // pred_check_branch
      %25 = sbr.rel (0) target = $region13
    $region12: #{net_forward.1} parent=1 // pred_region
      _
    $region13: #{net_forward.1} parent=1 // pred_fallthru
      _
    // Predicated region
    $region14: #{net_forward.1} parent=1 // pred_check
      _
    $region15: #{net_forward.1} parent=1 // pred_check_branch
      %27 = sbr.rel (0) target = $region17
    $region16: #{net_forward.1} parent=1 // pred_region
      %29 = dma.done [#allocation3], 3072
    $region17: #{net_forward.1} parent=1 // pred_fallthru
      _
    %v30 = vld [vmem:[%s0] sm:$0xff]
    %v31 = vld [vmem:[#allocation2] sm:$0xff]
    %v32 = vld [vmem:[#allocation2 + $0x8] sm:$0xff]
    %v33 = vld [vmem:[%s2] sm:$0x1]
    %v35 = vperm.slane %v33, 0
    %vm37 = vcmask 130048
    %v39 = vsel %vm37, %v30, 0
    %41 = vmatpush.msra.mxu0 0.0
    %42 = vmatpush.msra.mxu0 0.0
    %43 = vmatpush.msra.mxu0 0.0
    %44 = vmatpush.msra.mxu0 0.0
    %45 = vmatpush.msra.mxu0 0.0
    %46 = vmatpush.msra.mxu0 0.0
    %47 = vmatpush.msra.mxu0 0.0
    %48 = vmatpush.msra.mxu0 0.0
    %49 = vmatpush.msra.mxu0 0.0
    %50 = vmatpush.msra.mxu0 0.0
    %51 = vmatpush.msra.mxu0 0.0
    %52 = vmatpush.msra.mxu0 0.0
    %53 = vmatpush.msra.mxu0 0.0
    %54 = vmatpush.msra.mxu0 0.0
    %55 = vmatpush.msra.mxu0 %v32
    %56 = vmatpush.msra.mxu0 %v31
    %57 = vmatmul.f32.gmra.mxu0 %v39
    %v58 = vpop.f32.mrf.mxu0
    %v59 = vadd.f32 %v35, %v58
    %60 = vdwg.mxu0
    %v61 = vmax.f32 %v59, 0.0
    %s62 = scalar_lea.vmem [#allocation2], 16
    %v63 = vld [vmem:[%s62] sm:$0xff]
    %v64 = vld [vmem:[%s62 + $0x8] sm:$0xff]
    %s65 = scalar_lea.vmem %s2, 1
    %v66 = vld [vmem:[%s65] sm:$0x1]
    %v68 = vperm.slane %v66, 0
    %v71 = vsel %vm37, %v61, 0
    %73 = vmatpush.msra.mxu0 0.0
    %74 = vmatpush.msra.mxu0 0.0
    %75 = vmatpush.msra.mxu0 0.0
    %76 = vmatpush.msra.mxu0 0.0
    %77 = vmatpush.msra.mxu0 0.0
    %78 = vmatpush.msra.mxu0 0.0
    %79 = vmatpush.msra.mxu0 0.0
    %80 = vmatpush.msra.mxu0 0.0
    %81 = vmatpush.msra.mxu0 0.0
    %82 = vmatpush.msra.mxu0 0.0
    %83 = vmatpush.msra.mxu0 0.0
    %84 = vmatpush.msra.mxu0 0.0
    %85 = vmatpush.msra.mxu0 0.0
    %86 = vmatpush.msra.mxu0 0.0
    %87 = vmatpush.msra.mxu0 %v64
    %88 = vmatpush.msra.mxu0 %v63
    %89 = vmatmul.f32.gmra.mxu0 %v71
    %v90 = vpop.f32.mrf.mxu0
    %v91 = vadd.f32 %v68, %v90
    %92 = vdwg.mxu0
    %v93 = vmax.f32 %v91, 0.0
    %s94 = scalar_lea.vmem [#allocation2], 32
    %v95 = vld [vmem:[%s94] sm:$0xff]
    %v96 = vld [vmem:[%s94 + $0x8] sm:$0xff]
    %s97 = scalar_lea.vmem %s2, 2
    %v98 = vld [vmem:[%s97] sm:$0x1]
    %v100 = vperm.slane %v98, 0
    %v103 = vsel %vm37, %v93, 0
    %105 = vmatpush.msra.mxu0 0.0
    %106 = vmatpush.msra.mxu0 0.0
    %107 = vmatpush.msra.mxu0 0.0
    %108 = vmatpush.msra.mxu0 0.0
    %109 = vmatpush.msra.mxu0 0.0
    %110 = vmatpush.msra.mxu0 0.0
    %111 = vmatpush.msra.mxu0 0.0
    %112 = vmatpush.msra.mxu0 0.0
    %113 = vmatpush.msra.mxu0 0.0
    %114 = vmatpush.msra.mxu0 0.0
    %115 = vmatpush.msra.mxu0 0.0
    %116 = vmatpush.msra.mxu0 0.0
    %117 = vmatpush.msra.mxu0 0.0
    %118 = vmatpush.msra.mxu0 0.0
    %119 = vmatpush.msra.mxu0 %v96
    %120 = vmatpush.msra.mxu0 %v95
    %121 = vmatmul.f32.gmra.mxu0 %v103
    %v122 = vpop.f32.mrf.mxu0
    %v123 = vadd.f32 %v100, %v122
    %124 = vdwg.mxu0
    %v125 = vadd.f32 %v123, %v61
    %v126 = vmax.f32 %v125, 0.0
    %s127 = scalar_lea.vmem [#allocation2], 48
    %v128 = vld [vmem:[%s127] sm:$0xff]
    %v129 = vld [vmem:[%s127 + $0x8] sm:$0xff]
    %s130 = scalar_lea.vmem %s2, 3
    %v131 = vld [vmem:[%s130] sm:$0x1]
    %v133 = vperm.slane %v131, 0
    %v136 = vsel %vm37, %v126, 0
    %138 = vmatpush.msra.mxu0 0.0
    %139 = vmatpush.msra.mxu0 0.0
    %140 = vmatpush.msra.mxu0 0.0
    %141 = vmatpush.msra.mxu0 0.0
    %142 = vmatpush.msra.mxu0 0.0
    %143 = vmatpush.msra.mxu0 0.0
    %144 = vmatpush.msra.mxu0 0.0
    %145 = vmatpush.msra.mxu0 0.0
    %146 = vmatpush.msra.mxu0 0.0
    %147 = vmatpush.msra.mxu0 0.0
    %148 = vmatpush.msra.mxu0 0.0
    %149 = vmatpush.msra.mxu0 0.0
    %150 = vmatpush.msra.mxu0 0.0
    %151 = vmatpush.msra.mxu0 0.0
    %152 = vmatpush.msra.mxu0 %v129
    %153 = vmatpush.msra.mxu0 %v128
    %154 = vmatmul.f32.gmra.mxu0 %v136
    %v155 = vpop.f32.mrf.mxu0
    %v156 = vadd.f32 %v133, %v155
    %157 = vdwg.mxu0
    %v158 = vmax.f32 %v156, 0.0
    %s159 = scalar_lea.vmem [#allocation2], 64
    %v160 = vld [vmem:[%s159] sm:$0xff]
    %v161 = vld [vmem:[%s159 + $0x8] sm:$0xff]
    %s162 = scalar_lea.vmem %s2, 4
    %v163 = vld [vmem:[%s162] sm:$0x1]
    %v165 = vperm.slane %v163, 0
    %v168 = vsel %vm37, %v158, 0
    %170 = vmatpush.msra.mxu0 0.0
    %171 = vmatpush.msra.mxu0 0.0
    %172 = vmatpush.msra.mxu0 0.0
    %173 = vmatpush.msra.mxu0 0.0
    %174 = vmatpush.msra.mxu0 0.0
    %175 = vmatpush.msra.mxu0 0.0
    %176 = vmatpush.msra.mxu0 0.0
    %177 = vmatpush.msra.mxu0 0.0
    %178 = vmatpush.msra.mxu0 0.0
    %179 = vmatpush.msra.mxu0 0.0
    %180 = vmatpush.msra.mxu0 0.0
    %181 = vmatpush.msra.mxu0 0.0
    %182 = vmatpush.msra.mxu0 0.0
    %183 = vmatpush.msra.mxu0 0.0
    %184 = vmatpush.msra.mxu0 %v161
    %185 = vmatpush.msra.mxu0 %v160
    %186 = vmatmul.f32.gmra.mxu0 %v168
    %v187 = vpop.f32.mrf.mxu0
    %v188 = vadd.f32 %v165, %v187
    %189 = vdwg.mxu0
    %v190 = vadd.f32 %v188, %v126
    %v191 = vmax.f32 %v190, 0.0
    %s192 = scalar_lea.vmem [#allocation2], 80
    %v193 = vld [vmem:[%s192] sm:$0xff]
    %v194 = vld [vmem:[%s192 + $0x8] sm:$0xff]
    %s195 = scalar_lea.vmem %s2, 5
    %v196 = vld [vmem:[%s195] sm:$0x1]
    %v198 = vperm.slane %v196, 0
    %v201 = vsel %vm37, %v191, 0
    %203 = vmatpush.msra.mxu0 0.0
    %204 = vmatpush.msra.mxu0 0.0
    %205 = vmatpush.msra.mxu0 0.0
    %206 = vmatpush.msra.mxu0 0.0
    %207 = vmatpush.msra.mxu0 0.0
    %208 = vmatpush.msra.mxu0 0.0
    %209 = vmatpush.msra.mxu0 0.0
    %210 = vmatpush.msra.mxu0 0.0
    %211 = vmatpush.msra.mxu0 0.0
    %212 = vmatpush.msra.mxu0 0.0
    %213 = vmatpush.msra.mxu0 0.0
    %214 = vmatpush.msra.mxu0 0.0
    %215 = vmatpush.msra.mxu0 0.0
    %216 = vmatpush.msra.mxu0 0.0
    %217 = vmatpush.msra.mxu0 %v194
    %218 = vmatpush.msra.mxu0 %v193
    %219 = vmatmul.f32.gmra.mxu0 %v201
    %v220 = vpop.f32.mrf.mxu0
    %v221 = vadd.f32 %v198, %v220
    %222 = vdwg.mxu0
    %v223 = vmax.f32 %v221, 0.0
    %s224 = scalar_lea.vmem [#allocation2], 96
    %v225 = vld [vmem:[%s224] sm:$0xff]
    %v226 = vld [vmem:[%s224 + $0x8] sm:$0xff]
    %s227 = scalar_lea.vmem %s2, 6
    %v228 = vld [vmem:[%s227] sm:$0x1]
    %v230 = vperm.slane %v228, 0
    %v233 = vsel %vm37, %v223, 0
    %235 = vmatpush.msra.mxu0 0.0
    %236 = vmatpush.msra.mxu0 0.0
    %237 = vmatpush.msra.mxu0 0.0
    %238 = vmatpush.msra.mxu0 0.0
    %239 = vmatpush.msra.mxu0 0.0
    %240 = vmatpush.msra.mxu0 0.0
    %241 = vmatpush.msra.mxu0 0.0
    %242 = vmatpush.msra.mxu0 0.0
    %243 = vmatpush.msra.mxu0 0.0
    %244 = vmatpush.msra.mxu0 0.0
    %245 = vmatpush.msra.mxu0 0.0
    %246 = vmatpush.msra.mxu0 0.0
    %247 = vmatpush.msra.mxu0 0.0
    %248 = vmatpush.msra.mxu0 0.0
    %249 = vmatpush.msra.mxu0 %v226
    %250 = vmatpush.msra.mxu0 %v225
    %251 = vmatmul.f32.gmra.mxu0 %v233
    %v252 = vpop.f32.mrf.mxu0
    %v253 = vadd.f32 %v230, %v252
    %254 = vdwg.mxu0
    %v255 = vadd.f32 %v253, %v191
    %v256 = vmax.f32 %v255, 0.0
    %s257 = scalar_lea.vmem [#allocation2], 112
    %v258 = vld [vmem:[%s257] sm:$0xff]
    %v259 = vld [vmem:[%s257 + $0x8] sm:$0xff]
    %s260 = scalar_lea.vmem %s2, 7
    %v261 = vld [vmem:[%s260] sm:$0x1]
    %v263 = vperm.slane %v261, 0
    %v266 = vsel %vm37, %v256, 0
    %268 = vmatpush.msra.mxu0 0.0
    %269 = vmatpush.msra.mxu0 0.0
    %270 = vmatpush.msra.mxu0 0.0
    %271 = vmatpush.msra.mxu0 0.0
    %272 = vmatpush.msra.mxu0 0.0
    %273 = vmatpush.msra.mxu0 0.0
    %274 = vmatpush.msra.mxu0 0.0
    %275 = vmatpush.msra.mxu0 0.0
    %276 = vmatpush.msra.mxu0 0.0
    %277 = vmatpush.msra.mxu0 0.0
    %278 = vmatpush.msra.mxu0 0.0
    %279 = vmatpush.msra.mxu0 0.0
    %280 = vmatpush.msra.mxu0 0.0
    %281 = vmatpush.msra.mxu0 0.0
    %282 = vmatpush.msra.mxu0 %v259
    %283 = vmatpush.msra.mxu0 %v258
    %284 = vmatmul.f32.gmra.mxu0 %v266
    %v285 = vpop.f32.mrf.mxu0
    %v286 = vadd.f32 %v263, %v285
    %287 = vdwg.mxu0
    %v288 = vmax.f32 %v286, 0.0
    %s289 = scalar_lea.vmem [#allocation2], 128
    %v290 = vld [vmem:[%s289] sm:$0xff]
    %v291 = vld [vmem:[%s289 + $0x8] sm:$0xff]
    %s292 = scalar_lea.vmem %s2, 8
    %v293 = vld [vmem:[%s292] sm:$0x1]
    %v295 = vperm.slane %v293, 0
    %v298 = vsel %vm37, %v288, 0
    %300 = vmatpush.msra.mxu0 0.0
    %301 = vmatpush.msra.mxu0 0.0
    %302 = vmatpush.msra.mxu0 0.0
    %303 = vmatpush.msra.mxu0 0.0
    %304 = vmatpush.msra.mxu0 0.0
    %305 = vmatpush.msra.mxu0 0.0
    %306 = vmatpush.msra.mxu0 0.0
    %307 = vmatpush.msra.mxu0 0.0
    %308 = vmatpush.msra.mxu0 0.0
    %309 = vmatpush.msra.mxu0 0.0
    %310 = vmatpush.msra.mxu0 0.0
    %311 = vmatpush.msra.mxu0 0.0
    %312 = vmatpush.msra.mxu0 0.0
    %313 = vmatpush.msra.mxu0 0.0
    %314 = vmatpush.msra.mxu0 %v291
    %315 = vmatpush.msra.mxu0 %v290
    %316 = vmatmul.f32.gmra.mxu0 %v298
    %v317 = vpop.f32.mrf.mxu0
    %v318 = vadd.f32 %v295, %v317
    %319 = vdwg.mxu0
    %v320 = vadd.f32 %v318, %v256
    %v321 = vmax.f32 %v320, 0.0
    %s322 = scalar_lea.vmem [#allocation2], 144
    %v323 = vld [vmem:[%s322] sm:$0xff]
    %v324 = vld [vmem:[%s322 + $0x8] sm:$0xff]
    %s325 = scalar_lea.vmem %s2, 9
    %v326 = vld [vmem:[%s325] sm:$0x1]
    %v328 = vperm.slane %v326, 0
    %v331 = vsel %vm37, %v321, 0
    %333 = vmatpush.msra.mxu0 0.0
    %334 = vmatpush.msra.mxu0 0.0
    %335 = vmatpush.msra.mxu0 0.0
    %336 = vmatpush.msra.mxu0 0.0
    %337 = vmatpush.msra.mxu0 0.0
    %338 = vmatpush.msra.mxu0 0.0
    %339 = vmatpush.msra.mxu0 0.0
    %340 = vmatpush.msra.mxu0 0.0
    %341 = vmatpush.msra.mxu0 0.0
    %342 = vmatpush.msra.mxu0 0.0
    %343 = vmatpush.msra.mxu0 0.0
    %344 = vmatpush.msra.mxu0 0.0
    %345 = vmatpush.msra.mxu0 0.0
    %346 = vmatpush.msra.mxu0 0.0
    %347 = vmatpush.msra.mxu0 %v324
    %348 = vmatpush.msra.mxu0 %v323
    %349 = vmatmul.f32.gmra.mxu0 %v331
    %v350 = vpop.f32.mrf.mxu0
    %v351 = vadd.f32 %v328, %v350
    %352 = vdwg.mxu0
    %v353 = vmax.f32 %v351, 0.0
    %s354 = scalar_lea.vmem [#allocation2], 160
    %v355 = vld [vmem:[%s354] sm:$0xff]
    %v356 = vld [vmem:[%s354 + $0x8] sm:$0xff]
    %s357 = scalar_lea.vmem %s2, 10
    %v358 = vld [vmem:[%s357] sm:$0x1]
    %v360 = vperm.slane %v358, 0
    %v363 = vsel %vm37, %v353, 0
    %365 = vmatpush.msra.mxu0 0.0
    %366 = vmatpush.msra.mxu0 0.0
    %367 = vmatpush.msra.mxu0 0.0
    %368 = vmatpush.msra.mxu0 0.0
    %369 = vmatpush.msra.mxu0 0.0
    %370 = vmatpush.msra.mxu0 0.0
    %371 = vmatpush.msra.mxu0 0.0
    %372 = vmatpush.msra.mxu0 0.0
    %373 = vmatpush.msra.mxu0 0.0
    %374 = vmatpush.msra.mxu0 0.0
    %375 = vmatpush.msra.mxu0 0.0
    %376 = vmatpush.msra.mxu0 0.0
    %377 = vmatpush.msra.mxu0 0.0
    %378 = vmatpush.msra.mxu0 0.0
    %379 = vmatpush.msra.mxu0 %v356
    %380 = vmatpush.msra.mxu0 %v355
    %381 = vmatmul.f32.gmra.mxu0 %v363
    %v382 = vpop.f32.mrf.mxu0
    %v383 = vadd.f32 %v360, %v382
    %384 = vdwg.mxu0
    %v385 = vadd.f32 %v383, %v321
    %v386 = vmax.f32 %v385, 0.0
    %s387 = scalar_lea.vmem [#allocation2], 176
    %v388 = vld [vmem:[%s387] sm:$0xff]
    %v389 = vld [vmem:[%s387 + $0x8] sm:$0xff]
    %s390 = scalar_lea.vmem %s2, 11
    %v391 = vld [vmem:[%s390] sm:$0x1]
    %v393 = vperm.slane %v391, 0
    %v396 = vsel %vm37, %v386, 0
    %398 = vmatpush.msra.mxu0 0.0
    %399 = vmatpush.msra.mxu0 0.0
    %400 = vmatpush.msra.mxu0 0.0
    %401 = vmatpush.msra.mxu0 0.0
    %402 = vmatpush.msra.mxu0 0.0
    %403 = vmatpush.msra.mxu0 0.0
    %404 = vmatpush.msra.mxu0 0.0
    %405 = vmatpush.msra.mxu0 0.0
    %406 = vmatpush.msra.mxu0 0.0
    %407 = vmatpush.msra.mxu0 0.0
    %408 = vmatpush.msra.mxu0 0.0
    %409 = vmatpush.msra.mxu0 0.0
    %410 = vmatpush.msra.mxu0 0.0
    %411 = vmatpush.msra.mxu0 0.0
    %412 = vmatpush.msra.mxu0 %v389
    %413 = vmatpush.msra.mxu0 %v388
    %414 = vmatmul.f32.gmra.mxu0 %v396
    %v415 = vpop.f32.mrf.mxu0
    %v416 = vadd.f32 %v393, %v415
    %417 = vdwg.mxu0
    %418 = vst.msk [vmem:[%s3] sm:$0xff] %vm37, %v416
    // Predicated region
    $region18: #{net_forward.1} parent=1 // pred_check
      _
    $region19: #{net_forward.1} parent=1 // pred_check_branch
      %420 = sbr.rel (0) target = $region21
    $region20: #{net_forward.1} parent=1 // pred_region
      _
    $region21: #{net_forward.1} parent=1 // pred_fallthru
      _
    // Predicated region
    $region22: #{net_forward.1} parent=1 // pred_check
      _
    $region23: #{net_forward.1} parent=1 // pred_check_branch
      %422 = sbr.rel (0) target = $region25
    $region24: #{net_forward.1} parent=1 // pred_region
      _
    $region25: #{net_forward.1} parent=1 // pred_fallthru
      _
    %423 = vsyncpa [#allocation3], 1

</llo_original>
